<compile_context>
chip_gen: v6e
topology: v6e:2x2x1
jax: 0.10.0
libtpu: 0.0.40
codegen_flags: <defaults>
</compile_context>

<pallas_src>
import functools
import math

import jax
import jax.numpy as jnp
from jax.experimental import pallas as pl
from jax.experimental.pallas import tpu as pltpu


# ----------------------------------------------------------------------------
# Hardware-derived tiling constants
# ----------------------------------------------------------------------------
def _query_vmem_bytes():
    try:
        return int(pltpu.get_tpu_info().vmem_capacity_bytes)
    except Exception:
        return 64 * 1024 * 1024  # conservative default (v7x per-TC)


_VMEM_BYTES = _query_vmem_bytes()
_MAX_LANE_TILE = 2048 if _VMEM_BYTES >= 100 * 2**20 else 1024
_LANE = 128
_SINGLE_STEP_MAX = 256  # below this, one grid step (latency-dominated anyway)


def _round_up(x, m):
    return -(-x // m) * m


def _batch_tile(batch, col_bytes, param_bytes):
    """Lane-axis (batch) tile: full batch for small B; otherwise >=2
    lane-aligned steps (engages both v7x TensorCores), bounded by VMEM."""
    if batch <= _SINGLE_STEP_MAX:
        return batch
    budget = max(int(0.4 * _VMEM_BYTES) - 2 * param_bytes, _LANE * col_bytes)
    cap = (budget // col_bytes) // _LANE * _LANE
    cap = max(min(cap, _MAX_LANE_TILE), _LANE)
    tb = min(_round_up(-(-batch // 2), _LANE), cap)   # >= 2 grid steps
    return tb


# ----------------------------------------------------------------------------
# Kernels (batch on the lane axis; weights in (out, in) layout)
# ----------------------------------------------------------------------------
def _mm(w_ref, x, b_ref):
    """y = W @ x + b with f32 accumulation.  bf16 weights feed the MXU
    natively (activation cast to bf16 at the dot); f32 weights stay f32."""
    w = w_ref[...]
    if w.dtype == jnp.bfloat16:
        x = x.astype(jnp.bfloat16)
    else:
        w = w.astype(jnp.float32)
    y = jnp.dot(w, x, preferred_element_type=jnp.float32)
    return y + b_ref[...].astype(jnp.float32)


def _trunk(x_ref, w1_ref, b1_ref, w2_ref, b2_ref):
    """tanh(W2 @ tanh(W1 @ x + b1) + b2); activations stay f32 (v5e-safe)."""
    x = x_ref[...].astype(jnp.float32)
    h1 = jnp.tanh(_mm(w1_ref, x, b1_ref))
    h2 = jnp.tanh(_mm(w2_ref, h1, b2_ref))
    return h2


def actor_continuous_kernel(
    x_ref, w1_ref, b1_ref, w2_ref, b2_ref,
    wh_ref, bh_ref,            # fused [mean ; log_std] head: (2A, fc2), (2A, 1)
    out_ref,                   # (2A, TB): rows 0..A-1 = mean, A..2A-1 = log_std
    *, action_dim,
):
    h2 = _trunk(x_ref, w1_ref, b1_ref, w2_ref, b2_ref)
    head = _mm(wh_ref, h2, bh_ref)                        # (2A, TB), lane-dense
    # Row split lives on the sublane axis; for small 2A the whole-slab tanh +
    # select is a single vreg strip.  (For 2A >= 8-multiples a static row
    # split would halve the EUP tanh pushes.)
    row = jax.lax.broadcasted_iota(jnp.int32, head.shape, 0)
    out_ref[...] = jnp.where(row < action_dim,
                             jnp.tanh(head),               # mean
                             jnp.minimum(head, 1.0))       # clamp(log_std, -inf, 1)


def actor_discrete_kernel(
    x_ref, w1_ref, b1_ref, w2_ref, b2_ref,
    wp_ref, bp_ref,
    prob_ref,                  # (A, TB)
):
    h2 = _trunk(x_ref, w1_ref, b1_ref, w2_ref, b2_ref)
    logits = _mm(wp_ref, h2, bp_ref)                      # (A, TB)
    # Numerically stable softmax over the action (sublane) axis.
    m = jnp.max(logits, axis=0, keepdims=True)
    e = jnp.exp(logits - m)
    s = jnp.sum(e, axis=0, keepdims=True)
    r = pl.reciprocal(s, approx=True)                     # EUP vrcp (free slot)
    r = r * (2.0 - s * r)                                 # one Newton step -> ~f32 exact
    prob_ref[...] = e * r


# ----------------------------------------------------------------------------
# Wrapper
# ----------------------------------------------------------------------------
@functools.partial(jax.jit, static_argnames=("is_continuous",))
def actor_forward(state, params, *, is_continuous):
    """state: (B, state_dim) f32.  params (PyTorch (out,in) layout, fused head):
       continuous: (w1, b1, w2, b2, wh, bh)   wh=(2A,fc2), bh=(2A,1)
       discrete  : (w1, b1, w2, b2, wp, bp)   wp=(A,fc2),  bp=(A,1)
    Returns (mean, log_std) each (B, A), or probs (B, A)."""
    batch, state_dim = state.shape
    w1, b1, w2, b2, wh, bh = params
    fc1_dim, fc2_dim = w1.shape[0], w2.shape[0]
    head_out = wh.shape[0]

    if is_continuous:
        action_dim = head_out // 2
        kernel = functools.partial(actor_continuous_kernel, action_dim=action_dim)
    else:
        action_dim = head_out
        kernel = actor_discrete_kernel
    param_args = (w1, b1, w2, b2, wh, bh)

    # Batch on the lane axis (lane-dense activations / stores).
    x_t = state.T                                          # (state_dim, B)

    param_bytes = sum(int(a.size) * a.dtype.itemsize for a in param_args)
    # Per-batch-column f32 residency: 2x in, 2x out (double-buffered), trunk temps.
    col_bytes = 4 * (2 * state_dim + fc1_dim + fc2_dim + 3 * head_out)
    tb = _batch_tile(batch, col_bytes, param_bytes)
    grid = (pl.cdiv(batch, tb),)

    in_specs = [pl.BlockSpec((state_dim, tb), lambda i: (0, i))]
    # Weights / biases: same (full) block every step -> VMEM-resident.
    in_specs += [pl.BlockSpec(a.shape, lambda i: (0, 0)) for a in param_args]
    out_specs = pl.BlockSpec((head_out, tb), lambda i: (0, i))
    out_shape = jax.ShapeDtypeStruct((head_out, batch), jnp.float32)

    vmem_need = 2 * param_bytes + tb * col_bytes
    vmem_limit = int(min(max(2 * vmem_need, 32 * 2**20), int(0.9 * _VMEM_BYTES)))

    flops = 2 * batch * (state_dim * fc1_dim + fc1_dim * fc2_dim
                         + fc2_dim * head_out)
    transcendentals = batch * (fc1_dim + fc2_dim + head_out)
    bytes_accessed = (int(state.size) * 4 + param_bytes + batch * head_out * 4)

    out_t = pl.pallas_call(
        kernel,
        grid=grid,
        in_specs=in_specs,
        out_specs=out_specs,
        out_shape=out_shape,
        compiler_params=pltpu.CompilerParams(
            dimension_semantics=("parallel",),
            vmem_limit_bytes=vmem_limit),
        cost_estimate=pl.CostEstimate(
            flops=flops,
            transcendentals=transcendentals,
            bytes_accessed=bytes_accessed),
    )(x_t, *param_args)

    out = out_t.T                                          # (B, head_out)
    if is_continuous:
        return out[:, :action_dim], out[:, action_dim:]
    return out


# ----------------------------------------------------------------------------
# Deterministic parameter init (PyTorch nn.Linear default: U(+-1/sqrt(fan_in)))
# Weights in (out, in) layout, biases (out, 1); continuous head pre-fused.
# ----------------------------------------------------------------------------
def _linear_params(key, fan_in, fan_out, dtype):
    kw, kb = jax.random.split(key)
    bound = 1.0 / math.sqrt(fan_in)
    w = jax.random.uniform(kw, (fan_out, fan_in), jnp.float32, -bound, bound)
    b = jax.random.uniform(kb, (fan_out, 1), jnp.float32, -bound, bound)
    return w.astype(dtype), b.astype(dtype)


def init_actor_params(key, state_dim, action_dim, fc1_dim, fc2_dim,
                      is_continuous, dtype=jnp.float32):
    keys = jax.random.split(key, 4)
    w1, b1 = _linear_params(keys[0], state_dim, fc1_dim, dtype)
    w2, b2 = _linear_params(keys[1], fc1_dim, fc2_dim, dtype)
    if is_continuous:
        wm, bm = _linear_params(keys[2], fc2_dim, action_dim, dtype)
        ws, bs = _linear_params(keys[3], fc2_dim, action_dim, dtype)
        # Head fusion hoisted out of the forward path (done once at init).
        wh = jnp.concatenate([wm, ws], axis=0)   # (2A, fc2)
        bh = jnp.concatenate([bm, bs], axis=0)   # (2A, 1)
        return (w1, b1, w2, b2, wh, bh)
    wp, bp = _linear_params(keys[2], fc2_dim, action_dim, dtype)
    return (w1, b1, w2, b2, wp, bp)


# ----------------------------------------------------------------------------
# Reference (plain JAX, f32 math) for sanity checks
# ----------------------------------------------------------------------------
def actor_forward_ref(state, params, is_continuous):
    w1, b1, w2, b2, wh, bh = [jnp.asarray(a, jnp.float32) for a in params]
    h = jnp.tanh(state @ w1.T + b1.T)
    h = jnp.tanh(h @ w2.T + b2.T)
    y = h @ wh.T + bh.T
    if is_continuous:
        a = wh.shape[0] // 2
        return jnp.tanh(y[:, :a]), jnp.minimum(y[:, a:], 1.0)
    return jax.nn.softmax(y, axis=-1)


if __name__ == "__main__":
    key = jax.random.PRNGKey(0)
    k_state, k_big, k_pc, k_pd = jax.random.split(key, 4)

    # Small shapes consistent with the module's forward.
    batch, state_dim, action_dim, fc1_dim, fc2_dim = 8, 16, 4, 32, 32
    state = jax.random.normal(k_state, (batch, state_dim), jnp.float32)

    # ---- Continuous head, f32 params (exact f32 MXU path, tight tolerance) ----
    params_c = init_actor_params(k_pc, state_dim, action_dim, fc1_dim,
                                 fc2_dim, is_continuous=True)
    mean, log_std = actor_forward(state, params_c, is_continuous=True)
    jax.block_until_ready((mean, log_std))
    mean_ref, log_std_ref = actor_forward_ref(state, params_c, True)
    assert mean.shape == (batch, action_dim)
    assert jnp.allclose(mean, mean_ref, atol=1e-5)
    assert jnp.allclose(log_std, log_std_ref, atol=1e-5)

    # ---- Discrete head, f32 params ----
    params_d = init_actor_params(k_pd, state_dim, action_dim, fc1_dim,
                                 fc2_dim, is_continuous=False)
    probs = actor_forward(state, params_d, is_continuous=False)
    jax.block_until_ready(probs)
    probs_ref = actor_forward_ref(state, params_d, False)
    assert jnp.allclose(probs, probs_ref, atol=1e-5)
    assert jnp.allclose(jnp.sum(probs, axis=-1), 1.0, atol=1e-5)

    # ---- bf16 weights: native bf16 MXU path, f32 accumulation/activations ----
    params_c_bf16 = init_actor_params(k_pc, state_dim, action_dim, fc1_dim,
                                      fc2_dim, is_continuous=True,
                                      dtype=jnp.bfloat16)
    mean_b, log_std_b = actor_forward(state, params_c_bf16, is_continuous=True)
    jax.block_until_ready((mean_b, log_std_b))
    mean_b_ref, log_std_b_ref = actor_forward_ref(state, params_c_bf16, True)
    assert jnp.allclose(mean_b, mean_b_ref, atol=5e-2)
    assert jnp.allclose(log_std_b, log_std_b_ref, atol=5e-2)

    # ---- Larger batch exercising the lane-tiled grid (>=2 parallel steps) ----
    big_state = jax.random.normal(k_big, (1024, state_dim), jnp.float32)
    mean_big, log_std_big = actor_forward(big_state, params_c,
                                          is_continuous=True)
    jax.block_until_ready((mean_big, log_std_big))
    mean_big_ref, log_std_big_ref = actor_forward_ref(big_state, params_c, True)
    assert jnp.allclose(mean_big, mean_big_ref, atol=1e-5)
    assert jnp.allclose(log_std_big, log_std_big_ref, atol=1e-5)

    probs_big = actor_forward(big_state, params_d, is_continuous=False)
    jax.block_until_ready(probs_big)
    probs_big_ref = actor_forward_ref(big_state, params_d, False)
    assert jnp.allclose(probs_big, probs_big_ref, atol=1e-5)
    assert jnp.allclose(jnp.sum(probs_big, axis=-1), 1.0, atol=1e-5)

    print("KERNEL_OK")
</pallas_src>

<mosaic_0001>
module attributes {stable_mosaic.version = 11 : i64} {
  func.func @actor_continuous_kernel(%arg0: i32, %arg1: memref<16x8xf32, #tpu.memory_space<vmem>>, %arg2: memref<32x16xf32, #tpu.memory_space<vmem>>, %arg3: memref<32x1xf32, #tpu.memory_space<vmem>>, %arg4: memref<32x32xf32, #tpu.memory_space<vmem>>, %arg5: memref<32x1xf32, #tpu.memory_space<vmem>>, %arg6: memref<8x32xf32, #tpu.memory_space<vmem>>, %arg7: memref<8x1xf32, #tpu.memory_space<vmem>>, %arg8: memref<8x8xf32, #tpu.memory_space<vmem>>) attributes {dimension_semantics = [#tpu.dimension_semantics<parallel>], iteration_bounds = array<i64: 1>, scalar_prefetch = 0 : i64, scratch_operands = 0 : i64, tpu.core_type = #tpu.core_type<tc>, window_params = [{transform_indices = @transform_0, window_bounds = array<i64: 16, 8>}, {pipeline_mode = #tpu.pipeline_mode<synchronous>, transform_indices = @transform_1, window_bounds = array<i64: 32, 16>}, {pipeline_mode = #tpu.pipeline_mode<synchronous>, transform_indices = @transform_2, window_bounds = array<i64: 32, 1>}, {pipeline_mode = #tpu.pipeline_mode<synchronous>, transform_indices = @transform_3, window_bounds = array<i64: 32, 32>}, {pipeline_mode = #tpu.pipeline_mode<synchronous>, transform_indices = @transform_4, window_bounds = array<i64: 32, 1>}, {pipeline_mode = #tpu.pipeline_mode<synchronous>, transform_indices = @transform_5, window_bounds = array<i64: 8, 32>}, {pipeline_mode = #tpu.pipeline_mode<synchronous>, transform_indices = @transform_6, window_bounds = array<i64: 8, 1>}, {transform_indices = @transform_7, window_bounds = array<i64: 8, 8>}]} {
    %c0 = arith.constant 0 : index
    %c0_0 = arith.constant 0 : index
    %0 = vector.load %arg1[%c0, %c0_0] : memref<16x8xf32, #tpu.memory_space<vmem>>, vector<16x8xf32>
    %c0_1 = arith.constant 0 : index
    %c0_2 = arith.constant 0 : index
    %1 = vector.load %arg2[%c0_1, %c0_2] : memref<32x16xf32, #tpu.memory_space<vmem>>, vector<32x16xf32>
    %cst = arith.constant dense<0.000000e+00> : vector<32x8xf32>
    %2 = tpu.matmul %1, %0, %cst {dimension_numbers = #tpu.dot_dimension_numbers<[1], [0], [0], [1], [0, 0, 1, 1], [], []>} : vector<32x16xf32>, vector<16x8xf32>, vector<32x8xf32> -> vector<32x8xf32>
    %c0_3 = arith.constant 0 : index
    %c0_4 = arith.constant 0 : index
    %3 = vector.load %arg3[%c0_3, %c0_4] : memref<32x1xf32, #tpu.memory_space<vmem>>, vector<32x1xf32>
    %4 = vector.broadcast %3 : vector<32x1xf32> to vector<32x8xf32>
    %5 = arith.addf %2, %4 : vector<32x8xf32>
    %6 = math.tanh %5 : vector<32x8xf32>
    %c0_5 = arith.constant 0 : index
    %c0_6 = arith.constant 0 : index
    %7 = vector.load %arg4[%c0_5, %c0_6] : memref<32x32xf32, #tpu.memory_space<vmem>>, vector<32x32xf32>
    %cst_7 = arith.constant dense<0.000000e+00> : vector<32x8xf32>
    %8 = tpu.matmul %7, %6, %cst_7 {dimension_numbers = #tpu.dot_dimension_numbers<[1], [0], [0], [1], [0, 0, 1, 1], [], []>} : vector<32x32xf32>, vector<32x8xf32>, vector<32x8xf32> -> vector<32x8xf32>
    %c0_8 = arith.constant 0 : index
    %c0_9 = arith.constant 0 : index
    %9 = vector.load %arg5[%c0_8, %c0_9] : memref<32x1xf32, #tpu.memory_space<vmem>>, vector<32x1xf32>
    %10 = vector.broadcast %9 : vector<32x1xf32> to vector<32x8xf32>
    %11 = arith.addf %8, %10 : vector<32x8xf32>
    %12 = math.tanh %11 : vector<32x8xf32>
    %c0_10 = arith.constant 0 : index
    %c0_11 = arith.constant 0 : index
    %13 = vector.load %arg6[%c0_10, %c0_11] : memref<8x32xf32, #tpu.memory_space<vmem>>, vector<8x32xf32>
    %cst_12 = arith.constant dense<0.000000e+00> : vector<8x8xf32>
    %14 = tpu.matmul %13, %12, %cst_12 {dimension_numbers = #tpu.dot_dimension_numbers<[1], [0], [0], [1], [0, 0, 1, 1], [], []>} : vector<8x32xf32>, vector<32x8xf32>, vector<8x8xf32> -> vector<8x8xf32>
    %c0_13 = arith.constant 0 : index
    %c0_14 = arith.constant 0 : index
    %15 = vector.load %arg7[%c0_13, %c0_14] : memref<8x1xf32, #tpu.memory_space<vmem>>, vector<8x1xf32>
    %16 = vector.broadcast %15 : vector<8x1xf32> to vector<8x8xf32>
    %17 = arith.addf %14, %16 : vector<8x8xf32>
    %18 = tpu.iota {dimensions = array<i32: 0>} : vector<8x8xi32>
    %c4_i32 = arith.constant 4 : i32
    %19 = vector.broadcast %c4_i32 : i32 to vector<8x8xi32>
    %20 = arith.cmpi slt, %18, %19 : vector<8x8xi32>
    %21 = math.tanh %17 : vector<8x8xf32>
    %cst_15 = arith.constant 1.000000e+00 : f32
    %22 = vector.broadcast %cst_15 : f32 to vector<8x8xf32>
    %23 = arith.minimumf %17, %22 : vector<8x8xf32>
    %24 = arith.select %20, %21, %23 : vector<8x8xi1>, vector<8x8xf32>
    %c0_16 = arith.constant 0 : index
    %c0_17 = arith.constant 0 : index
    %25 = vector.load %arg8[%c0_16, %c0_17] : memref<8x8xf32, #tpu.memory_space<vmem>>, vector<8x8xf32>
    tpu.vector_store %arg8[%c0_16, %c0_17], %24 {strides = array<i32>} : memref<8x8xf32, #tpu.memory_space<vmem>>, vector<8x8xf32>,
    return
  }
  func.func @transform_0(%arg0: i32) -> (i32, i32) {
    %c0_i32 = arith.constant 0 : i32
    %c0_i32_0 = arith.constant 0 : i32
    return %c0_i32, %arg0 : i32, i32
  }
  func.func @transform_1(%arg0: i32) -> (i32, i32) {
    %c0_i32 = arith.constant 0 : i32
    %c0_i32_0 = arith.constant 0 : i32
    %c0_i32_1 = arith.constant 0 : i32
    return %c0_i32, %c0_i32_0 : i32, i32
  }
  func.func @transform_2(%arg0: i32) -> (i32, i32) {
    %c0_i32 = arith.constant 0 : i32
    %c0_i32_0 = arith.constant 0 : i32
    %c0_i32_1 = arith.constant 0 : i32
    return %c0_i32, %c0_i32_0 : i32, i32
  }
  func.func @transform_3(%arg0: i32) -> (i32, i32) {
    %c0_i32 = arith.constant 0 : i32
    %c0_i32_0 = arith.constant 0 : i32
    %c0_i32_1 = arith.constant 0 : i32
    return %c0_i32, %c0_i32_0 : i32, i32
  }
  func.func @transform_4(%arg0: i32) -> (i32, i32) {
    %c0_i32 = arith.constant 0 : i32
    %c0_i32_0 = arith.constant 0 : i32
    %c0_i32_1 = arith.constant 0 : i32
    return %c0_i32, %c0_i32_0 : i32, i32
  }
  func.func @transform_5(%arg0: i32) -> (i32, i32) {
    %c0_i32 = arith.constant 0 : i32
    %c0_i32_0 = arith.constant 0 : i32
    %c0_i32_1 = arith.constant 0 : i32
    return %c0_i32, %c0_i32_0 : i32, i32
  }
  func.func @transform_6(%arg0: i32) -> (i32, i32) {
    %c0_i32 = arith.constant 0 : i32
    %c0_i32_0 = arith.constant 0 : i32
    %c0_i32_1 = arith.constant 0 : i32
    return %c0_i32, %c0_i32_0 : i32, i32
  }
  func.func @transform_7(%arg0: i32) -> (i32, i32) {
    %c0_i32 = arith.constant 0 : i32
    %c0_i32_0 = arith.constant 0 : i32
    return %c0_i32, %arg0 : i32, i32
  }
}

</mosaic_0001>

<llo_original>
// kernel: actor_forward.1
$region0: #{actor_forward.1}
  #allocation0 [shape = 'u32[]', space=smem, size = 0x4, offset = 0x4, fixed_abs, tag = 'smem constant byte address 0x4 - core index']
  #allocation1 [shape = 'u32[144,128]{1,0:T(1,128)}', space=vmem, size = 0x12000, scoped, tag = 'internal scratch']
  %s0 = inlined_call_operand.vmem [shape: f32[16,8], index: 0, kind: input, shape index: {}]
  %s1 = inlined_call_operand.vmem [shape: f32[32,16], index: 1, kind: input, shape index: {}]
  %s2 = inlined_call_operand.vmem [shape: f32[32,1], index: 2, kind: input, shape index: {}]
  %s3 = inlined_call_operand.vmem [shape: f32[32,32], index: 3, kind: input, shape index: {}]
  %s4 = inlined_call_operand.vmem [shape: f32[32,1], index: 4, kind: input, shape index: {}]
  %s5 = inlined_call_operand.vmem [shape: f32[8,32], index: 5, kind: input, shape index: {}]
  %s6 = inlined_call_operand.vmem [shape: f32[8,1], index: 6, kind: input, shape index: {}]
  %s7 = inlined_call_operand.vmem [shape: f32[8,8], index: 7, kind: output, shape index: {}]
  %s8 = sld [smem:[#allocation0]]
  $region38: #{actor_forward.1} parent=0
    _
  %s10 = ssub.s32 1, %s8
  %s11 = scalar_select 0, %s10, %s8
  // Predicated region
  $region2: #{actor_forward.1} parent=0 // pred_check
    _
  $region3: #{actor_forward.1} parent=0 // pred_check_branch
    %13 = sbr.rel (0) target = $region5
  $region4: #{actor_forward.1} parent=0 // pred_region
    _
  $region5: #{actor_forward.1} parent=0 // pred_fallthru
    _
  // Predicated region
  $region6: #{actor_forward.1} parent=0 // pred_check
    _
  $region7: #{actor_forward.1} parent=0 // pred_check_branch
    %15 = sbr.rel (0) target = $region9
  $region8: #{actor_forward.1} parent=0 // pred_region
    _
  $region9: #{actor_forward.1} parent=0 // pred_fallthru
    _
  // Predicated region
  $region10: #{actor_forward.1} parent=0 // pred_check
    _
  $region11: #{actor_forward.1} parent=0 // pred_check_branch
    %17 = sbr.rel (0) target = $region13
  $region12: #{actor_forward.1} parent=0 // pred_region
    _
  $region13: #{actor_forward.1} parent=0 // pred_fallthru
    _
  // Predicated region
  $region14: #{actor_forward.1} parent=0 // pred_check
    _
  $region15: #{actor_forward.1} parent=0 // pred_check_branch
    %19 = sbr.rel (0) target = $region17
  $region16: #{actor_forward.1} parent=0 // pred_region
    _
  $region17: #{actor_forward.1} parent=0 // pred_fallthru
    _
  // Predicated region
  $region18: #{actor_forward.1} parent=0 // pred_check
    _
  $region19: #{actor_forward.1} parent=0 // pred_check_branch
    %21 = sbr.rel (0) target = $region21
  $region20: #{actor_forward.1} parent=0 // pred_region
    _
  $region21: #{actor_forward.1} parent=0 // pred_fallthru
    _
  // Predicated region
  $region22: #{actor_forward.1} parent=0 // pred_check
    _
  $region23: #{actor_forward.1} parent=0 // pred_check_branch
    %23 = sbr.rel (0) target = $region25
  $region24: #{actor_forward.1} parent=0 // pred_region
    _
  $region25: #{actor_forward.1} parent=0 // pred_fallthru
    _
  // Predicated region
  $region26: #{actor_forward.1} parent=0 // pred_check
    _
  $region27: #{actor_forward.1} parent=0 // pred_check_branch
    %25 = sbr.rel (0) target = $region29
  $region28: #{actor_forward.1} parent=0 // pred_region
    _
  $region29: #{actor_forward.1} parent=0 // pred_fallthru
    _
  %v26 = vld [vmem:[%s0] sm:$0xff]
  %v27 = vld [vmem:[%s0 + $0x8] sm:$0xff]
  %v28 = vld [vmem:[%s1] sm:$0xff]
  %v29 = vld [vmem:[%s1 + $0x8] sm:$0xff]
  %v30 = vld [vmem:[%s1 + $0x10] sm:$0xff]
  %v31 = vld [vmem:[%s1 + $0x18] sm:$0xff]
  %v32 = vld [vmem:[%s2] sm:$0xff]
  %v33 = vld [vmem:[%s2 + $0x8] sm:$0xff]
  %v34 = vld [vmem:[%s2 + $0x10] sm:$0xff]
  %v35 = vld [vmem:[%s2 + $0x18] sm:$0xff]
  %37 = vset.pattern.permute.xlu0 0
  %38 = vperm.xlu0 %37, %v32
  %v39 = vpop.permute.xlu0 %38
  %42 = vset.pattern.permute.xlu0 0
  %43 = vperm.xlu0 %42, %v33
  %v44 = vpop.permute.xlu0 %43
  %47 = vset.pattern.permute.xlu0 0
  %48 = vperm.xlu0 %47, %v34
  %v49 = vpop.permute.xlu0 %48
  %52 = vset.pattern.permute.xlu0 0
  %53 = vperm.xlu0 %52, %v35
  %v54 = vpop.permute.xlu0 %53
  %vm56 = vcmask 130048
  %v58 = vsel %vm56, %v28, 0
  %v61 = vsel %vm56, %v29, 0
  %v64 = vsel %vm56, %v30, 0
  %v67 = vsel %vm56, %v31, 0
  %69 = vmatprep.subr.mxu0 0.0
  %70 = vmatpush1.msra.mxu0 0.0
  %71 = vmatprep.subr.mxu0 0.0
  %72 = vmatpush1.msra.mxu0 0.0
  %73 = vmatprep.subr.mxu0 0.0
  %74 = vmatpush1.msra.mxu0 0.0
  %75 = vmatprep.subr.mxu0 0.0
  %76 = vmatpush1.msra.mxu0 0.0
  %77 = vmatprep.subr.mxu0 0.0
  %78 = vmatpush1.msra.mxu0 0.0
  %79 = vmatprep.subr.mxu0 0.0
  %80 = vmatpush1.msra.mxu0 0.0
  %81 = vmatprep.subr.mxu0 0.0
  %82 = vmatpush1.msra.mxu0 0.0
  %83 = vmatprep.subr.mxu0 0.0
  %84 = vmatpush1.msra.mxu0 0.0
  %85 = vmatprep.subr.mxu0 0.0
  %86 = vmatpush1.msra.mxu0 0.0
  %87 = vmatprep.subr.mxu0 0.0
  %88 = vmatpush1.msra.mxu0 0.0
  %89 = vmatprep.subr.mxu0 0.0
  %90 = vmatpush1.msra.mxu0 0.0
  %91 = vmatprep.subr.mxu0 0.0
  %92 = vmatpush1.msra.mxu0 0.0
  %93 = vmatprep.subr.mxu0 0.0
  %94 = vmatpush1.msra.mxu0 0.0
  %95 = vmatprep.subr.mxu0 0.0
  %96 = vmatpush1.msra.mxu0 0.0
  %97 = vmatprep.subr.mxu0 0.0
  %98 = vmatpush1.msra.mxu0 %v27
  %99 = vmatprep.subr.mxu0 0.0
  %100 = vmatpush1.msra.mxu0 %v26
  %101 = vmatprep.subr.mxu0 0.0
  %102 = vmatpush2.msra.mxu0 0.0
  %103 = vmatprep.subr.mxu0 0.0
  %104 = vmatpush2.msra.mxu0 0.0
  %105 = vmatprep.subr.mxu0 0.0
  %106 = vmatpush2.msra.mxu0 0.0
  %107 = vmatprep.subr.mxu0 0.0
  %108 = vmatpush2.msra.mxu0 0.0
  %109 = vmatprep.subr.mxu0 0.0
  %110 = vmatpush2.msra.mxu0 0.0
  %111 = vmatprep.subr.mxu0 0.0
  %112 = vmatpush2.msra.mxu0 0.0
  %113 = vmatprep.subr.mxu0 0.0
  %114 = vmatpush2.msra.mxu0 0.0
  %115 = vmatprep.subr.mxu0 0.0
  %116 = vmatpush2.msra.mxu0 0.0
  %117 = vmatprep.subr.mxu0 0.0
  %118 = vmatpush2.msra.mxu0 0.0
  %119 = vmatprep.subr.mxu0 0.0
  %120 = vmatpush2.msra.mxu0 0.0
  %121 = vmatprep.subr.mxu0 0.0
  %122 = vmatpush2.msra.mxu0 0.0
  %123 = vmatprep.subr.mxu0 0.0
  %124 = vmatpush2.msra.mxu0 0.0
  %125 = vmatprep.subr.mxu0 0.0
  %126 = vmatpush2.msra.mxu0 0.0
  %127 = vmatprep.subr.mxu0 0.0
  %128 = vmatpush2.msra.mxu0 0.0
  %129 = vmatprep.subr.mxu0 0.0
  %130 = vmatpush2.msra.mxu0 0.0
  %131 = vmatprep.subr.mxu0 0.0
  %132 = vmatpush2.msra.mxu0 0.0
  %133 = vmatprep.mubr.f32.mxu0 0.0
  %134 = vmatmul.mubr.f32.gmra.mxu0 %v58
  %v135 = vpop.f32.mrf.mxu0
  %v136 = vadd.f32 %v39, %v135
  %v137 = vpop.f32.mrf.mxu0
  %138 = vmatprep.mubr.f32.mxu0 0.0
  %139 = vmatmul.mubr.f32.gmra.mxu0 %v61
  %v140 = vpop.f32.mrf.mxu0
  %v141 = vadd.f32 %v44, %v140
  %v142 = vpop.f32.mrf.mxu0
  %143 = vmatprep.mubr.f32.mxu0 0.0
  %144 = vmatmul.mubr.f32.gmra.mxu0 %v64
  %v145 = vpop.f32.mrf.mxu0
  %v146 = vadd.f32 %v49, %v145
  %v147 = vpop.f32.mrf.mxu0
  %148 = vmatprep.mubr.f32.mxu0 0.0
  %149 = vmatmul.mubr.f32.gmra.mxu0 %v67
  %v150 = vpop.f32.mrf.mxu0
  %v151 = vadd.f32 %v54, %v150
  %v152 = vpop.f32.mrf.mxu0
  %153 = vdwg.mxu0
  %v154 = vtanh.pop %v136
  %v155 = vtanh.pop %v141
  %v156 = vtanh.pop %v146
  %v157 = vtanh.pop %v151
  %v158 = vld [vmem:[%s3] sm:$0xff]
  %v159 = vld [vmem:[%s3 + $0x8] sm:$0xff]
  %v160 = vld [vmem:[%s3 + $0x10] sm:$0xff]
  %v161 = vld [vmem:[%s3 + $0x18] sm:$0xff]
  %v162 = vld [vmem:[%s4] sm:$0xff]
  %v163 = vld [vmem:[%s4 + $0x8] sm:$0xff]
  %v164 = vld [vmem:[%s4 + $0x10] sm:$0xff]
  %v165 = vld [vmem:[%s4 + $0x18] sm:$0xff]
  %167 = vset.pattern.permute.xlu0 0
  %168 = vperm.xlu0 %167, %v162
  %v169 = vpop.permute.xlu0 %168
  %172 = vset.pattern.permute.xlu0 0
  %173 = vperm.xlu0 %172, %v163
  %v174 = vpop.permute.xlu0 %173
  %177 = vset.pattern.permute.xlu0 0
  %178 = vperm.xlu0 %177, %v164
  %v179 = vpop.permute.xlu0 %178
  %182 = vset.pattern.permute.xlu0 0
  %183 = vperm.xlu0 %182, %v165
  %v184 = vpop.permute.xlu0 %183
  %vm186 = vcmask 261120
  %v188 = vsel %vm186, %v158, 0
  %v191 = vsel %vm186, %v159, 0
  %v194 = vsel %vm186, %v160, 0
  %v197 = vsel %vm186, %v161, 0
  %199 = vmatprep.subr.mxu0 0.0
  %200 = vmatpush1.msra.mxu0 0.0
  %201 = vmatprep.subr.mxu0 0.0
  %202 = vmatpush1.msra.mxu0 0.0
  %203 = vmatprep.subr.mxu0 0.0
  %204 = vmatpush1.msra.mxu0 0.0
  %205 = vmatprep.subr.mxu0 0.0
  %206 = vmatpush1.msra.mxu0 0.0
  %207 = vmatprep.subr.mxu0 0.0
  %208 = vmatpush1.msra.mxu0 0.0
  %209 = vmatprep.subr.mxu0 0.0
  %210 = vmatpush1.msra.mxu0 0.0
  %211 = vmatprep.subr.mxu0 0.0
  %212 = vmatpush1.msra.mxu0 0.0
  %213 = vmatprep.subr.mxu0 0.0
  %214 = vmatpush1.msra.mxu0 0.0
  %215 = vmatprep.subr.mxu0 0.0
  %216 = vmatpush1.msra.mxu0 0.0
  %217 = vmatprep.subr.mxu0 0.0
  %218 = vmatpush1.msra.mxu0 0.0
  %219 = vmatprep.subr.mxu0 0.0
  %220 = vmatpush1.msra.mxu0 0.0
  %221 = vmatprep.subr.mxu0 0.0
  %222 = vmatpush1.msra.mxu0 0.0
  %223 = vmatprep.subr.mxu0 0.0
  %224 = vmatpush1.msra.mxu0 %v157
  %225 = vmatprep.subr.mxu0 0.0
  %226 = vmatpush1.msra.mxu0 %v156
  %227 = vmatprep.subr.mxu0 0.0
  %228 = vmatpush1.msra.mxu0 %v155
  %229 = vmatprep.subr.mxu0 0.0
  %230 = vmatpush1.msra.mxu0 %v154
  %231 = vmatprep.subr.mxu0 0.0
  %232 = vmatpush2.msra.mxu0 0.0
  %233 = vmatprep.subr.mxu0 0.0
  %234 = vmatpush2.msra.mxu0 0.0
  %235 = vmatprep.subr.mxu0 0.0
  %236 = vmatpush2.msra.mxu0 0.0
  %237 = vmatprep.subr.mxu0 0.0
  %238 = vmatpush2.msra.mxu0 0.0
  %239 = vmatprep.subr.mxu0 0.0
  %240 = vmatpush2.msra.mxu0 0.0
  %241 = vmatprep.subr.mxu0 0.0
  %242 = vmatpush2.msra.mxu0 0.0
  %243 = vmatprep.subr.mxu0 0.0
  %244 = vmatpush2.msra.mxu0 0.0
  %245 = vmatprep.subr.mxu0 0.0
  %246 = vmatpush2.msra.mxu0 0.0
  %247 = vmatprep.subr.mxu0 0.0
  %248 = vmatpush2.msra.mxu0 0.0
  %249 = vmatprep.subr.mxu0 0.0
  %250 = vmatpush2.msra.mxu0 0.0
  %251 = vmatprep.subr.mxu0 0.0
  %252 = vmatpush2.msra.mxu0 0.0
  %253 = vmatprep.subr.mxu0 0.0
  %254 = vmatpush2.msra.mxu0 0.0
  %255 = vmatprep.subr.mxu0 0.0
  %256 = vmatpush2.msra.mxu0 0.0
  %257 = vmatprep.subr.mxu0 0.0
  %258 = vmatpush2.msra.mxu0 0.0
  %259 = vmatprep.subr.mxu0 0.0
  %260 = vmatpush2.msra.mxu0 0.0
  %261 = vmatprep.subr.mxu0 0.0
  %262 = vmatpush2.msra.mxu0 0.0
  %263 = vmatprep.mubr.f32.mxu0 0.0
  %264 = vmatmul.mubr.f32.gmra.mxu0 %v188
  %v265 = vpop.f32.mrf.mxu0
  %v266 = vadd.f32 %v169, %v265
  %v267 = vpop.f32.mrf.mxu0
  %268 = vmatprep.mubr.f32.mxu0 0.0
  %269 = vmatmul.mubr.f32.gmra.mxu0 %v191
  %v270 = vpop.f32.mrf.mxu0
  %v271 = vadd.f32 %v174, %v270
  %v272 = vpop.f32.mrf.mxu0
  %273 = vmatprep.mubr.f32.mxu0 0.0
  %274 = vmatmul.mubr.f32.gmra.mxu0 %v194
  %v275 = vpop.f32.mrf.mxu0
  %v276 = vadd.f32 %v179, %v275
  %v277 = vpop.f32.mrf.mxu0
  %278 = vmatprep.mubr.f32.mxu0 0.0
  %279 = vmatmul.mubr.f32.gmra.mxu0 %v197
  %v280 = vpop.f32.mrf.mxu0
  %v281 = vadd.f32 %v184, %v280
  %v282 = vpop.f32.mrf.mxu0
  %283 = vdwg.mxu0
  %v284 = vtanh.pop %v266
  %v285 = vtanh.pop %v271
  %v286 = vtanh.pop %v276
  %v287 = vtanh.pop %v281
  %v288 = vld [vmem:[%s5] sm:$0xff]
  %v289 = vld [vmem:[%s6] sm:$0xff]
  %291 = vset.pattern.permute.xlu0 0
  %292 = vperm.xlu0 %291, %v289
  %v293 = vpop.permute.xlu0 %292
  %v296 = vsel %vm186, %v288, 0
  %298 = vmatprep.subr.mxu0 0.0
  %299 = vmatpush1.msra.mxu0 0.0
  %300 = vmatprep.subr.mxu0 0.0
  %301 = vmatpush1.msra.mxu0 0.0
  %302 = vmatprep.subr.mxu0 0.0
  %303 = vmatpush1.msra.mxu0 0.0
  %304 = vmatprep.subr.mxu0 0.0
  %305 = vmatpush1.msra.mxu0 0.0
  %306 = vmatprep.subr.mxu0 0.0
  %307 = vmatpush1.msra.mxu0 0.0
  %308 = vmatprep.subr.mxu0 0.0
  %309 = vmatpush1.msra.mxu0 0.0
  %310 = vmatprep.subr.mxu0 0.0
  %311 = vmatpush1.msra.mxu0 0.0
  %312 = vmatprep.subr.mxu0 0.0
  %313 = vmatpush1.msra.mxu0 0.0
  %314 = vmatprep.subr.mxu0 0.0
  %315 = vmatpush1.msra.mxu0 0.0
  %316 = vmatprep.subr.mxu0 0.0
  %317 = vmatpush1.msra.mxu0 0.0
  %318 = vmatprep.subr.mxu0 0.0
  %319 = vmatpush1.msra.mxu0 0.0
  %320 = vmatprep.subr.mxu0 0.0
  %321 = vmatpush1.msra.mxu0 0.0
  %322 = vmatprep.subr.mxu0 0.0
  %323 = vmatpush1.msra.mxu0 %v287
  %324 = vmatprep.subr.mxu0 0.0
  %325 = vmatpush1.msra.mxu0 %v286
  %326 = vmatprep.subr.mxu0 0.0
  %327 = vmatpush1.msra.mxu0 %v285
  %328 = vmatprep.subr.mxu0 0.0
  %329 = vmatpush1.msra.mxu0 %v284
  %330 = vmatprep.subr.mxu0 0.0
  %331 = vmatpush2.msra.mxu0 0.0
  %332 = vmatprep.subr.mxu0 0.0
  %333 = vmatpush2.msra.mxu0 0.0
  %334 = vmatprep.subr.mxu0 0.0
  %335 = vmatpush2.msra.mxu0 0.0
  %336 = vmatprep.subr.mxu0 0.0
  %337 = vmatpush2.msra.mxu0 0.0
  %338 = vmatprep.subr.mxu0 0.0
  %339 = vmatpush2.msra.mxu0 0.0
  %340 = vmatprep.subr.mxu0 0.0
  %341 = vmatpush2.msra.mxu0 0.0
  %342 = vmatprep.subr.mxu0 0.0
  %343 = vmatpush2.msra.mxu0 0.0
  %344 = vmatprep.subr.mxu0 0.0
  %345 = vmatpush2.msra.mxu0 0.0
  %346 = vmatprep.subr.mxu0 0.0
  %347 = vmatpush2.msra.mxu0 0.0
  %348 = vmatprep.subr.mxu0 0.0
  %349 = vmatpush2.msra.mxu0 0.0
  %350 = vmatprep.subr.mxu0 0.0
  %351 = vmatpush2.msra.mxu0 0.0
  %352 = vmatprep.subr.mxu0 0.0
  %353 = vmatpush2.msra.mxu0 0.0
  %354 = vmatprep.subr.mxu0 0.0
  %355 = vmatpush2.msra.mxu0 0.0
  %356 = vmatprep.subr.mxu0 0.0
  %357 = vmatpush2.msra.mxu0 0.0
  %358 = vmatprep.subr.mxu0 0.0
  %359 = vmatpush2.msra.mxu0 0.0
  %360 = vmatprep.subr.mxu0 0.0
  %361 = vmatpush2.msra.mxu0 0.0
  %362 = vmatprep.mubr.f32.mxu0 0.0
  %363 = vmatmul.mubr.f32.gmra.mxu0 %v296
  %v364 = vpop.f32.mrf.mxu0
  %v365 = vadd.f32 %v293, %v364
  %v366 = vpop.f32.mrf.mxu0
  %367 = vdwg.mxu0
  %v368 = vlaneseq
  %v369 = vshrl.u32 %v368, 7
  %vm370 = vcmp.lt.s32.totalorder %v369, 4
  %v371 = vtanh.pop %v365
  %v372 = vmin.f32 %v365, 1.0
  %v373 = vsel %vm370, %v371, %v372
  %vm374 = vcmask 64512
  %375 = vst.msk [vmem:[%s7] sm:$0xff] %vm374, %v373
  // Predicated region
  $region30: #{actor_forward.1} parent=0 // pred_check
    _
  $region31: #{actor_forward.1} parent=0 // pred_check_branch
    %377 = sbr.rel (0) target = $region33
  $region32: #{actor_forward.1} parent=0 // pred_region
    _
  $region33: #{actor_forward.1} parent=0 // pred_fallthru
    _
  // Predicated region
  $region34: #{actor_forward.1} parent=0 // pred_check
    _
  $region35: #{actor_forward.1} parent=0 // pred_check_branch
    %379 = sbr.rel (0) target = $region37
  $region36: #{actor_forward.1} parent=0 // pred_region
    _
  $region37: #{actor_forward.1} parent=0 // pred_fallthru
    _

</llo_original>
